<compile_context>
chip_gen: v6e
topology: v6e:2x2x1
jax: 0.10.0
libtpu: 0.0.40
codegen_flags: <defaults>
</compile_context>

<pallas_src>
import functools

import jax
import jax.numpy as jnp
from jax.experimental import pallas as pl
from jax.experimental.pallas import tpu as pltpu


_LANE = 512            # lane-dense streaming width (multiple of 128)
_BLOCK_BYTES = 4 << 20 # ~4 MiB per (logits, target) block pair -> ~8 MiB double-buffered


def _logit_loss_kernel(x_ref, t_ref, out_ref, *, block_rows, lane, total_elems,
                       needs_mask):
    # (block_rows, lane) streamed tiles; target arrives in its native dtype and
    # is cast to f32 on-core (this is where BCEWithLogitsLoss's .float() lives).
    x = x_ref[...].astype(jnp.float32)
    t = t_ref[...].astype(jnp.float32)

    # Numerically stable BCE-with-logits: max(x,0) - x*t + log1p(exp(-|x|)).
    elem = jnp.maximum(x, 0.0) - x * t + jnp.log1p(jnp.exp(-jnp.abs(x)))

    if needs_mask:
        # Flat element index of every lane.  Zeroes out (a) the zero-padded lane
        # tail appended in the wrapper and (b) the undefined block-padding rows
        # of the last (partial) grid block.  This MUST stay a select
        # (jnp.where), not arithmetic masking (elem * mask): the padded garbage
        # may produce NaN/Inf and a select does not propagate it into the sum.
        i = pl.program_id(0)
        row = jax.lax.broadcasted_iota(jnp.int32, elem.shape, 0) + i * block_rows
        col = jax.lax.broadcasted_iota(jnp.int32, elem.shape, 1)
        elem = jnp.where(row * lane + col < total_elems, elem, 0.0)

    # Lane-dense per-block partial sums: reduce only the sublane axis and park
    # the (1, lane) result in row 0 of this block's (8, lane) output tile
    # (8 rows keeps the out BlockSpec (8,128)-compliant).  The tiny cross-lane
    # reduce + mean scale happen once in plain JAX on the wrapper side, so the
    # steady-state loop is pure streaming with no serialized accumulator.
    out_ref[...] = jnp.zeros_like(out_ref)
    out_ref[0:1, :] = jnp.sum(elem, axis=0, keepdims=True)


def bce_with_logits_mean(logits, target, *, block_rows=None, lane=_LANE):
    """logits, target: same shape. Returns scalar f32 mean BCE-with-logits loss."""
    logits = jnp.asarray(logits)
    target = jnp.asarray(target)
    if target.dtype == jnp.bool_:
        # Keep target HBM traffic at 1 B/elem instead of materializing an f32 copy.
        target = target.astype(jnp.int8)
    if logits.shape != target.shape:
        raise ValueError(f"shape mismatch: {logits.shape} vs {target.shape}")

    total = int(logits.size)

    # Lane-dense view: flatten and reshape to (rows, lane).  The reshape of a
    # contiguous array is free; a copy is only made when B*C isn't already a
    # multiple of `lane` (and stays in the native, narrow dtypes).
    x = logits.reshape(-1)
    t = target.reshape(-1)
    if total <= lane:
        lane_eff, rows_total = total, 1     # single full-extent block
    else:
        lane_eff = lane
        pad = (-total) % lane_eff
        if pad:
            x = jnp.pad(x, (0, pad))
            t = jnp.pad(t, (0, pad))
        rows_total = (total + pad) // lane_eff
    x = x.reshape(rows_total, lane_eff)
    t = t.reshape(rows_total, lane_eff)

    # Block rows sized by bytes (~roofline knee), multiple of 32 so packed
    # sub-32-bit dtypes never need relayout; full-extent when the array is small.
    if block_rows is None:
        per_row = lane_eff * (x.dtype.itemsize + t.dtype.itemsize)
        block_rows = max(32, (_BLOCK_BYTES // per_row) // 32 * 32)
    if block_rows >= rows_total:
        block_rows = rows_total             # full-dim block is always legal
    else:
        block_rows = max(8, block_rows // 8 * 8)
    grid_rows = pl.cdiv(rows_total, block_rows)

    needs_mask = (rows_total * lane_eff != total) or (rows_total % block_rows != 0)

    kernel = functools.partial(
        _logit_loss_kernel,
        block_rows=block_rows,
        lane=lane_eff,
        total_elems=total,
        needs_mask=needs_mask,
    )

    partials = pl.pallas_call(
        kernel,
        out_shape=jax.ShapeDtypeStruct((grid_rows * 8, lane_eff), jnp.float32),
        grid_spec=pltpu.PrefetchScalarGridSpec(
            num_scalar_prefetch=0,
            grid=(grid_rows,),
            in_specs=[
                pl.BlockSpec((block_rows, lane_eff), lambda i: (i, 0)),
                pl.BlockSpec((block_rows, lane_eff), lambda i: (i, 0)),
            ],
            # Each grid step owns its own (8, lane) partial tile -> no resident
            # accumulator, so the axis can be truly parallel (v7x dual-TC).
            out_specs=pl.BlockSpec((8, lane_eff), lambda i: (i, 0)),
        ),
        compiler_params=pltpu.CompilerParams(
            dimension_semantics=("parallel",),
        ),
        cost_estimate=pl.CostEstimate(
            flops=int(6 * total),
            transcendentals=int(2 * total),
            bytes_accessed=int(
                total * (x.dtype.itemsize + t.dtype.itemsize)
                + grid_rows * 8 * lane_eff * 4
            ),
        ),
    )(x, t)

    # Tiny finalization in plain JAX: sum the per-block lane partials and scale.
    return jnp.sum(partials) * (1.0 / float(total))


def logit_loss(inputs, targets, *, block_rows=None):
    """Mirrors LogitLoss.forward: dicts with 'logit' and 'weak' keys."""
    return bce_with_logits_mean(inputs["logit"], targets["weak"],
                                block_rows=block_rows)


def _reference(logits, target):
    x = jnp.asarray(logits).astype(jnp.float32)
    t = jnp.asarray(target).astype(jnp.float32)
    return jnp.mean(jnp.maximum(x, 0.0) - x * t + jnp.log1p(jnp.exp(-jnp.abs(x))))


if __name__ == "__main__":
    key = jax.random.PRNGKey(0)

    # Case 1: small shapes consistent with the module (batch=2, classes=4),
    # float targets (as after PyTorch's .float()).
    B, C = 2, 4
    k1, k2 = jax.random.split(key)
    logits = jax.random.normal(k1, (B, C), jnp.float32)
    target = (jax.random.uniform(k2, (B, C)) > 0.5).astype(jnp.float32)
    loss = jax.block_until_ready(logit_loss({"logit": logits}, {"weak": target}))
    ref = _reference(logits, target)
    assert jnp.allclose(loss, ref, rtol=1e-5, atol=1e-6), (loss, ref)

    # Case 2: native (bool) weak labels, B*C not lane-aligned -> wrapper pad +
    # element mask, single full-extent block.
    B2, C2 = 50, 24
    k3, k4 = jax.random.split(k1)
    logits2 = jax.random.normal(k3, (B2, C2), jnp.float32)
    target2 = jax.random.uniform(k4, (B2, C2)) > 0.5   # bool, streamed as int8
    loss2 = jax.block_until_ready(logit_loss({"logit": logits2}, {"weak": target2}))
    ref2 = _reference(logits2, target2)
    assert jnp.allclose(loss2, ref2, rtol=1e-5, atol=1e-6), (loss2, ref2)

    # Case 3: force a multi-step parallel grid with a partial last block
    # (rows_total=42, block_rows=16 -> 3 grid steps, masked tail).
    B3, C3 = 70, 300
    k5, k6 = jax.random.split(k3)
    logits3 = jax.random.normal(k5, (B3, C3), jnp.float32)
    target3 = (jax.random.uniform(k6, (B3, C3)) > 0.5).astype(jnp.float32)
    loss3 = jax.block_until_ready(
        logit_loss({"logit": logits3}, {"weak": target3}, block_rows=16)
    )
    ref3 = _reference(logits3, target3)
    assert jnp.allclose(loss3, ref3, rtol=1e-5, atol=1e-6), (loss3, ref3)

    print("KERNEL_OK")
</pallas_src>

<mosaic_0001>
module attributes {stable_mosaic.version = 11 : i64} {
  func.func @_logit_loss_kernel(%arg0: i32, %arg1: memref<1x8xf32, #tpu.memory_space<vmem>>, %arg2: memref<1x8xf32, #tpu.memory_space<vmem>>, %arg3: memref<8x8xf32, #tpu.memory_space<vmem>>) attributes {dimension_semantics = [#tpu.dimension_semantics<parallel>], iteration_bounds = array<i64: 1>, scalar_prefetch = 0 : i64, scratch_operands = 0 : i64, tpu.core_type = #tpu.core_type<tc>, window_params = [{transform_indices = @transform_0, window_bounds = array<i64: 1, 8>}, {transform_indices = @transform_1, window_bounds = array<i64: 1, 8>}, {transform_indices = @transform_2, window_bounds = array<i64: 8, 8>}]} {
    %c0 = arith.constant 0 : index
    %c0_0 = arith.constant 0 : index
    %0 = vector.load %arg1[%c0, %c0_0] : memref<1x8xf32, #tpu.memory_space<vmem>>, vector<1x8xf32>
    %c0_1 = arith.constant 0 : index
    %c0_2 = arith.constant 0 : index
    %1 = vector.load %arg2[%c0_1, %c0_2] : memref<1x8xf32, #tpu.memory_space<vmem>>, vector<1x8xf32>
    %cst = arith.constant 0.000000e+00 : f32
    %2 = vector.broadcast %cst : f32 to vector<1x8xf32>
    %3 = arith.maximumf %0, %2 : vector<1x8xf32>
    %4 = arith.mulf %0, %1 : vector<1x8xf32>
    %5 = arith.subf %3, %4 : vector<1x8xf32>
    %6 = math.absf %0 : vector<1x8xf32>
    %cst_3 = arith.constant 0.000000e+00 : f32
    %7 = vector.broadcast %cst_3 : f32 to vector<1x8xf32>
    %8 = arith.subf %7, %6 : vector<1x8xf32>
    %9 = math.exp %8 : vector<1x8xf32>
    %10 = math.log1p %9 : vector<1x8xf32>
    %11 = arith.addf %5, %10 : vector<1x8xf32>
    %cst_4 = arith.constant 0.000000e+00 : f32
    %12 = vector.broadcast %cst_4 : f32 to vector<8x8xf32>
    %c0_5 = arith.constant 0 : index
    %c0_6 = arith.constant 0 : index
    %13 = vector.load %arg3[%c0_5, %c0_6] : memref<8x8xf32, #tpu.memory_space<vmem>>, vector<8x8xf32>
    tpu.vector_store %arg3[%c0_5, %c0_6], %12 {strides = array<i32>} : memref<8x8xf32, #tpu.memory_space<vmem>>, vector<8x8xf32>,
    %cst_7 = arith.constant dense<0.000000e+00> : vector<8xf32>
    %14 = vector.multi_reduction <add>, %11, %cst_7 [0] : vector<1x8xf32> to vector<8xf32>
    %15 = vector.shape_cast %14 : vector<8xf32> to vector<1x8xf32>
    %c0_8 = arith.constant 0 : index
    %c0_9 = arith.constant 0 : index
    %16 = vector.load %arg3[%c0_8, %c0_9] : memref<8x8xf32, #tpu.memory_space<vmem>>, vector<1x8xf32>
    tpu.vector_store %arg3[%c0_8, %c0_9], %15 {strides = array<i32>} : memref<8x8xf32, #tpu.memory_space<vmem>>, vector<1x8xf32>,
    return
  }
  func.func @transform_0(%arg0: i32) -> (i32, i32) {
    %c0_i32 = arith.constant 0 : i32
    %c0_i32_0 = arith.constant 0 : i32
    return %arg0, %c0_i32 : i32, i32
  }
  func.func @transform_1(%arg0: i32) -> (i32, i32) {
    %c0_i32 = arith.constant 0 : i32
    %c0_i32_0 = arith.constant 0 : i32
    return %arg0, %c0_i32 : i32, i32
  }
  func.func @transform_2(%arg0: i32) -> (i32, i32) {
    %c0_i32 = arith.constant 0 : i32
    %c0_i32_0 = arith.constant 0 : i32
    return %arg0, %c0_i32 : i32, i32
  }
}

</mosaic_0001>

<llo_original>
// kernel: tpu_custom_call.1
$region0: #{tpu_custom_call.1}
  #allocation0 [shape = 'u32[]', space=smem, size = 0x4, offset = 0x4, fixed_abs, tag = 'smem constant byte address 0x4 - core index']
  #allocation1 [shape = 'u32[144,128]{1,0:T(1,128)}', space=vmem, size = 0x12000, scoped, tag = 'internal scratch']
  %s0 = inlined_call_operand.hbm [shape: f32[1,8], index: 0, kind: input, shape index: {}]
  %s1 = inlined_call_operand.vmem [shape: f32[1,8], index: 1, kind: input, shape index: {}]
  %s2 = inlined_call_operand.hbm [shape: f32[8,8], index: 2, kind: output, shape index: {}]
  %s3 = sld [smem:[#allocation0]]
  $region22: #{tpu_custom_call.1} parent=0
    _
  %s5 = ssub.s32 1, %s3
  %s6 = scalar_select 0, %s5, %s3
  $region1: #{tpu_custom_call.1} parent=0
    #allocation2 [shape = 'u8[512]{0}', space=vmem, size = 0x400, scoped, tag = 'input window, operand 0, single buffered']
    #allocation3 [shape = 's32[1]{0}', space=sflag, size = 0x4, scoped, tag = 'scoped memory for tpu_custom_call.1']
    #allocation4 [shape = 's32[1]{0}', space=sflag, size = 0x4, scoped, tag = 'scoped memory for tpu_custom_call.1']
    #allocation5 [shape = 'u8[4096]{0}', space=vmem, size = 0x1000, scoped, tag = 'output window, operand 0, single buffered']
    %7 = vsyncpa [#allocation3], 0
    %8 = vsyncpa [#allocation4], 0
    // Predicated region
    $region2: #{tpu_custom_call.1} parent=1 // pred_check
      _
    $region3: #{tpu_custom_call.1} parent=1 // pred_check_branch
      %10 = sbr.rel (0) target = $region5
    $region4: #{tpu_custom_call.1} parent=1 // pred_region
      %s12 = ssub.s32 16, 16
      %13 = vsyncadd [#allocation3], %s12
      %s15 = sshll.u32 [#allocation2], 4
      %s16 = int_to_ptr.vmem [resolvable:$true] %s15
      %18 = dma.hbm_to_vmem [thread:$0]  %s0, 16, %s16, [#allocation3]
    $region5: #{tpu_custom_call.1} parent=1 // pred_fallthru
      _
    // Predicated region
    $region6: #{tpu_custom_call.1} parent=1 // pred_check
      _
    $region7: #{tpu_custom_call.1} parent=1 // pred_check_branch
      %20 = sbr.rel (0) target = $region9
    $region8: #{tpu_custom_call.1} parent=1 // pred_region
      _
    $region9: #{tpu_custom_call.1} parent=1 // pred_fallthru
      _
    // Predicated region
    $region10: #{tpu_custom_call.1} parent=1 // pred_check
      _
    $region11: #{tpu_custom_call.1} parent=1 // pred_check_branch
      %22 = sbr.rel (0) target = $region13
    $region12: #{tpu_custom_call.1} parent=1 // pred_region
      %23 = dma.done [#allocation3], 16
    $region13: #{tpu_custom_call.1} parent=1 // pred_fallthru
      _
    %v24 = vld [vmem:[#allocation2] sm:$0x1]
    %v25 = vld [vmem:[%s1] sm:$0x1]
    %v26 = vmax.f32 %v24, 0.0
    %v27 = vmul.f32 %v24, %v25
    %v28 = vsub.f32 %v26, %v27
    %v29 = vand.u32 2147483647, %v24
    %v30 = vsub.f32 0.0, %v29
    %v31 = vmul.f32 %v30, 1.442695
    %v32 = vpow.pop %v31
    %v33 = vadd.f32 %v32, 1.0
    %v34 = vlog2.pop %v33
    %v35 = vmul.f32 %v34, 0.6931472
    %v36 = vmul.f32 -0.5, %v32
    %v37 = vadd.f32 %v36, 1.0
    %v38 = vmul.f32 %v37, %v32
    %v39 = vand.u32 2147483647, %v32
    %vm40 = vcmp.lt.f32.partialorder %v39, 0.0004427343
    %v41 = vsel %vm40, %v38, %v35
    %v42 = vadd.f32 %v28, %v41
    %vm43 = vcmask 64512
    %44 = vst.msk [vmem:[#allocation5] sm:$0xff] %vm43, 0.0
    %v45 = vadd.f32 %v42, 0.0
    %vm46 = vcmask 57344
    %47 = vst.msk [vmem:[#allocation5] sm:$0x1] %vm46, %v45
    // Predicated region
    $region14: #{tpu_custom_call.1} parent=1 // pred_check
      _
    $region15: #{tpu_custom_call.1} parent=1 // pred_check_branch
      %49 = sbr.rel (0) target = $region17
    $region16: #{tpu_custom_call.1} parent=1 // pred_region
      %s51 = ssub.s32 128, 128
      %52 = vsyncadd [#allocation4], %s51
      %s54 = sshll.u32 [#allocation5], 4
      %s55 = int_to_ptr.vmem [resolvable:$true] %s54
      %57 = dma.vmem_to_hbm [thread:$0]  %s55, 128, %s2, [#allocation4]
    $region17: #{tpu_custom_call.1} parent=1 // pred_fallthru
      _
    // Predicated region
    $region18: #{tpu_custom_call.1} parent=1 // pred_check
      _
    $region19: #{tpu_custom_call.1} parent=1 // pred_check_branch
      %59 = sbr.rel (0) target = $region21
    $region20: #{tpu_custom_call.1} parent=1 // pred_region
      %60 = dma.done [#allocation4], 128
    $region21: #{tpu_custom_call.1} parent=1 // pred_fallthru
      _
    %61 = vsyncpa [#allocation3], 1
    %62 = vsyncpa [#allocation4], 1

</llo_original>
